<compile_context>
chip_gen: v7x
topology: tpu7x:2x2x1
jax: 0.10.0
libtpu: 0.0.40
codegen_flags: <defaults>
</compile_context>

<pallas_src>
import functools

import jax
import jax.numpy as jnp
from jax.experimental import pallas as pl
from jax.experimental.pallas import tpu as pltpu


# ----------------------------------------------------------------------------
# In-kernel math helpers (f32)
# ----------------------------------------------------------------------------

_SQRT_HALF = 0.7071067811865476


def _erf_poly(x):
    # Abramowitz & Stegun 7.1.26 rational approximation, |error| < 1.5e-7.
    a1, a2, a3, a4, a5 = (0.254829592, -0.284496736, 1.421413741,
                          -1.453152027, 1.061405429)
    p = 0.3275911
    sign = jnp.where(x < 0.0, -1.0, 1.0)
    ax = jnp.abs(x)
    # Divide on the EUP (approx reciprocal), keeping the VALU slot free.
    t = pl.reciprocal(1.0 + p * ax, approx=True)
    poly = ((((a5 * t + a4) * t + a3) * t + a2) * t + a1) * t
    return sign * (1.0 - poly * jnp.exp(-ax * ax))


def _gelu_exact(x):
    # torch nn.GELU() default:  0.5 * x * (1 + erf(x / sqrt(2)))
    return 0.5 * x * (1.0 + _erf_poly(x * _SQRT_HALF))


# ----------------------------------------------------------------------------
# Fused FFN kernels
#   grid = (M_tiles, inner_tiles); the inner (hidden) axis is the reduction axis (last).
#   acc_ref: f32 VMEM accumulator; o_ref is bf16 and written once at the last j step.
# ----------------------------------------------------------------------------

def _ffn_kernel(x_ref, w1_ref, b1_ref, w2_ref, b2_ref, o_ref, acc_ref):
    j = pl.program_id(1)

    @pl.when(j == 0)
    def _():
        acc_ref[...] = jnp.zeros_like(acc_ref)

    # First matmul (bf16 operands, f32 acc) + bias + exact GELU on the inner tile.
    h = jnp.dot(x_ref[...], w1_ref[...],
                preferred_element_type=jnp.float32) + b1_ref[...]
    h = _gelu_exact(h)
    # TODO(synk): Dropout(p=0.0) is an identity in forward, so no RNG mask is generated.

    # Second matmul accumulates into the resident f32 tile.
    acc_ref[...] += jnp.dot(h.astype(jnp.bfloat16), w2_ref[...],
                            preferred_element_type=jnp.float32)

    @pl.when(j == pl.num_programs(1) - 1)
    def _():
        o_ref[...] = (acc_ref[...] + b2_ref[...]).astype(o_ref.dtype)


def _ffn_geglu_kernel(x_ref, wvg_ref, bvg_ref, w2_ref, b2_ref, o_ref, acc_ref):
    j = pl.program_id(1)
    tj = w2_ref.shape[0]          # static: value/gate split point (multiple of 128)

    @pl.when(j == 0)
    def _():
        acc_ref[...] = jnp.zeros_like(acc_ref)

    # Single MXU pass over the interleaved [value | gate] weight block for this tile.
    proj = jnp.dot(x_ref[...], wvg_ref[...],
                   preferred_element_type=jnp.float32) + bvg_ref[...]
    v = proj[:, :tj]
    g = proj[:, tj:]
    h = v * _gelu_exact(g)

    acc_ref[...] += jnp.dot(h.astype(jnp.bfloat16), w2_ref[...],
                            preferred_element_type=jnp.float32)

    @pl.when(j == pl.num_programs(1) - 1)
    def _():
        o_ref[...] = (acc_ref[...] + b2_ref[...]).astype(o_ref.dtype)


# ----------------------------------------------------------------------------
# One-time parameter preparation (hoisted out of the per-call path)
# ----------------------------------------------------------------------------

def _round_up(x, m):
    return (x + m - 1) // m * m


def prepare_ffn_params(params, *, glu=False, tj=256):
    """Lay out torch-Linear params (weight: (out_features, in_features)) for the kernel.

    Returns (prepped, meta):
      prepped: dict of padded / transposed / bf16 weight & f32 bias arrays
      meta:    static dict of dims / padded extents / tile size (trace-time constants)
    """
    f32, bf16 = jnp.float32, jnp.bfloat16
    w1 = jnp.asarray(params['w1'], f32)
    b1 = jnp.asarray(params['b1'], f32)
    w2 = jnp.asarray(params['w2'], f32)
    b2 = jnp.asarray(params['b2'], f32)

    dim_out, inner = w2.shape
    dim = w1.shape[1]

    Kp = _round_up(dim, 128)                      # contracting dim -> dense MXU passes
    tj_eff = tj if inner >= tj else _round_up(inner, 128)
    Jp = _round_up(inner, tj_eff)
    Np = _round_up(dim_out, 128)
    nj = Jp // tj_eff

    w2t = jnp.pad(w2.T, ((0, Jp - inner), (0, Np - dim_out))).astype(bf16)
    b2p = jnp.pad(b2, (0, Np - dim_out)).reshape(1, Np)

    if glu:
        # torch GEGLU: proj(x).chunk(2) -> (value, gate); rows [0:inner] are value.
        wv = jnp.pad(w1[:inner].T, ((0, Kp - dim), (0, Jp - inner))).astype(bf16)
        wg = jnp.pad(w1[inner:].T, ((0, Kp - dim), (0, Jp - inner))).astype(bf16)
        # Interleave per j-tile:  block j = [ value cols of tile j | gate cols of tile j ].
        wvg = jnp.concatenate(
            [wv.reshape(Kp, nj, 1, tj_eff), wg.reshape(Kp, nj, 1, tj_eff)],
            axis=2).reshape(Kp, 2 * Jp)
        bv = jnp.pad(b1[:inner], (0, Jp - inner))
        bg = jnp.pad(b1[inner:], (0, Jp - inner))
        bvg = jnp.concatenate(
            [bv.reshape(nj, 1, tj_eff), bg.reshape(nj, 1, tj_eff)],
            axis=1).reshape(1, 2 * Jp)
        prepped = dict(w1=wvg, b1=bvg, w2=w2t, b2=b2p)
    else:
        w1t = jnp.pad(w1.T, ((0, Kp - dim), (0, Jp - inner))).astype(bf16)
        b1p = jnp.pad(b1, (0, Jp - inner)).reshape(1, Jp)
        prepped = dict(w1=w1t, b1=b1p, w2=w2t, b2=b2p)

    meta = dict(glu=glu, dim=dim, inner=inner, dim_out=dim_out,
                Kp=Kp, Jp=Jp, Np=Np, tj=tj_eff)
    return prepped, meta


def _pick_tm(M, tm):
    """Pick the M tile: multiple of 16 (bf16 sublane pairs), >=2 tiles when M allows."""
    if M >= 2 * tm:
        return tm
    if M >= 32:
        # Split into (at least) two M tiles so both v7x TensorCores get work.
        return min(tm, _round_up(pl.cdiv(M, 2), 16))
    return _round_up(max(M, 16), 16)


# ----------------------------------------------------------------------------
# Wrapper: pallas_call with BlockSpec tiling
# ----------------------------------------------------------------------------

def feed_forward(x, prepped, *, meta, tm=256, out_dtype=jnp.bfloat16):
    """FeedForward.forward(x) with pre-laid-out params (see prepare_ffn_params).

    tm: M tile. 256 fits all chips; on v5e/v6e (128 MiB VMEM) tm=512 further amortises
        weight re-streaming. Keep 256 on v7x (64 MiB VMEM / TC).
    """
    glu = meta['glu']
    dim, inner, dim_out = meta['dim'], meta['inner'], meta['dim_out']
    Kp, Jp, Np, tj = meta['Kp'], meta['Jp'], meta['Np'], meta['tj']

    orig_shape = x.shape
    assert orig_shape[-1] == dim, (orig_shape, dim)
    x2 = x.reshape(-1, dim)
    M = x2.shape[0]

    tm_eff = _pick_tm(M, tm)
    Mp = _round_up(M, tm_eff)

    # Skip the pad / cast passes when already aligned.
    if (Mp != M) or (Kp != dim):
        x2 = jnp.pad(x2, ((0, Mp - M), (0, Kp - dim)))
    if x2.dtype != jnp.bfloat16:
        x2 = x2.astype(jnp.bfloat16)

    grid = (Mp // tm_eff, Jp // tj)

    x_spec = pl.BlockSpec((tm_eff, Kp), lambda i, j: (i, 0))
    w2_spec = pl.BlockSpec((tj, Np), lambda i, j: (j, 0))
    b2_spec = pl.BlockSpec((1, Np), lambda i, j: (0, 0))
    out_spec = pl.BlockSpec((tm_eff, Np), lambda i, j: (i, 0))

    if glu:
        w1_spec = pl.BlockSpec((Kp, 2 * tj), lambda i, j: (0, j))
        b1_spec = pl.BlockSpec((1, 2 * tj), lambda i, j: (0, j))
        kernel = _ffn_geglu_kernel
    else:
        w1_spec = pl.BlockSpec((Kp, tj), lambda i, j: (0, j))
        b1_spec = pl.BlockSpec((1, tj), lambda i, j: (0, j))
        kernel = _ffn_kernel

    in_specs = [x_spec, w1_spec, b1_spec, w2_spec, b2_spec]
    operands = (x2, prepped['w1'], prepped['b1'], prepped['w2'], prepped['b2'])

    # --- VMEM budget: double-buffered inputs + bf16 output + f32 accumulator scratch. ---
    wcols = (2 * tj) if glu else tj
    blk_bytes = (tm_eff * Kp * 2           # x block (bf16)
                 + Kp * wcols * 2          # first-matmul weight block (bf16)
                 + 8 * wcols * 4           # first bias block (f32, sublane-padded)
                 + tj * Np * 2             # W2 block (bf16)
                 + 8 * Np * 4              # b2 block (f32)
                 + tm_eff * Np * 2)        # output block (bf16)
    footprint = 2 * blk_bytes + tm_eff * Np * 4   # double-buffering + f32 acc scratch
    vmem_limit = int(min(max(2 * footprint, 32 << 20), 96 << 20))

    flops = 2 * M * dim * inner * (2 if glu else 1) + 2 * M * inner * dim_out
    bytes_accessed = (M * dim * 2
                      + (Kp * wcols * (Jp // tj) + Jp * Np) * 2
                      + M * Np * 2)
    cost = pl.CostEstimate(flops=flops, transcendentals=M * inner,
                           bytes_accessed=bytes_accessed)

    out_p = pl.pallas_call(
        kernel,
        out_shape=jax.ShapeDtypeStruct((Mp, Np), out_dtype),
        grid_spec=pltpu.PrefetchScalarGridSpec(
            num_scalar_prefetch=0,
            grid=grid,
            in_specs=in_specs,
            out_specs=out_spec,
            scratch_shapes=[pltpu.VMEM((tm_eff, Np), jnp.float32)],
        ),
        compiler_params=pltpu.CompilerParams(
            dimension_semantics=("parallel", "arbitrary"),
            vmem_limit_bytes=vmem_limit),
        cost_estimate=cost,
    )(*operands)

    if (Mp != M) or (Np != dim_out):
        out_p = out_p[:M, :dim_out]
    return out_p.reshape(orig_shape[:-1] + (dim_out,))


# ----------------------------------------------------------------------------
# Pure-JAX reference (same bf16 operand rounding, exact erf GELU)
# ----------------------------------------------------------------------------

def ffn_reference(x, params, *, glu=False):
    f32 = jnp.float32
    rb = lambda a: a.astype(jnp.bfloat16).astype(f32)
    xb = rb(x)
    w1, b1 = rb(params['w1']), params['b1'].astype(f32)
    w2, b2 = rb(params['w2']), params['b2'].astype(f32)
    proj = jnp.einsum('...d,nd->...n', xb, w1, preferred_element_type=f32) + b1
    if glu:
        inner = w2.shape[1]
        v, g = proj[..., :inner], proj[..., inner:]
        h = v * jax.nn.gelu(g, approximate=False)
    else:
        h = jax.nn.gelu(proj, approximate=False)
    h = rb(h)  # dropout p=0.0 -> identity
    return jnp.einsum('...k,nk->...n', h, w2, preferred_element_type=f32) + b2


# ----------------------------------------------------------------------------
# Main
# ----------------------------------------------------------------------------

if __name__ == "__main__":
    B, S, DIM, MULT = 2, 8, 32, 4
    INNER = DIM * MULT          # 128
    DIM_OUT = DIM               # default(dim_out, dim)

    key = jax.random.PRNGKey(0)
    k = jax.random.split(key, 8)
    x = jax.random.normal(k[0], (B, S, DIM), jnp.float32)

    # FeedForward(dim=32, mult=4, glu=False, dropout=0.0)
    params = {
        'w1': 0.05 * jax.random.normal(k[1], (INNER, DIM), jnp.float32),
        'b1': 0.05 * jax.random.normal(k[2], (INNER,), jnp.float32),
        'w2': 0.05 * jax.random.normal(k[3], (DIM_OUT, INNER), jnp.float32),
        'b2': 0.05 * jax.random.normal(k[4], (DIM_OUT,), jnp.float32),
    }
    # FeedForward(dim=32, mult=4, glu=True) -> GEGLU projection (2*inner outputs)
    params_glu = {
        'w1': 0.05 * jax.random.normal(k[5], (2 * INNER, DIM), jnp.float32),
        'b1': 0.05 * jax.random.normal(k[6], (2 * INNER,), jnp.float32),
        'w2': params['w2'],
        'b2': params['b2'],
    }

    # ---- glu=False ----
    prepped, meta = prepare_ffn_params(params, glu=False)
    jax.block_until_ready(jax.tree_util.tree_leaves(prepped))   # one-time prep
    ff = jax.jit(functools.partial(feed_forward, meta=meta))
    out = ff(x, prepped)
    jax.block_until_ready(out)
    assert out.shape == (B, S, DIM_OUT), out.shape
    ref = ffn_reference(x, params, glu=False)
    out32 = out.astype(jnp.float32)
    err = float(jnp.max(jnp.abs(out32 - ref)))
    assert jnp.allclose(out32, ref, atol=5e-3, rtol=5e-3), f"glu=False max|err|={err}"

    # ---- glu=True (GEGLU) ----
    prepped_g, meta_g = prepare_ffn_params(params_glu, glu=True)
    jax.block_until_ready(jax.tree_util.tree_leaves(prepped_g))
    ff_glu = jax.jit(functools.partial(feed_forward, meta=meta_g))
    out_g = ff_glu(x, prepped_g)
    jax.block_until_ready(out_g)
    assert out_g.shape == (B, S, DIM_OUT), out_g.shape
    ref_g = ffn_reference(x, params_glu, glu=True)
    out_g32 = out_g.astype(jnp.float32)
    err_g = float(jnp.max(jnp.abs(out_g32 - ref_g)))
    assert jnp.allclose(out_g32, ref_g, atol=5e-3, rtol=5e-3), f"glu=True max|err|={err_g}"

    print("KERNEL_OK")
</pallas_src>

<mosaic_0001>
module attributes {stable_mosaic.version = 11 : i64} {
  func.func @_ffn_kernel(%arg0: i32, %arg1: i32, %arg2: memref<16x128xbf16, #tpu.memory_space<vmem>>, %arg3: memref<128x128xbf16, #tpu.memory_space<vmem>>, %arg4: memref<1x128xf32, #tpu.memory_space<vmem>>, %arg5: memref<128x128xbf16, #tpu.memory_space<vmem>>, %arg6: memref<1x128xf32, #tpu.memory_space<vmem>>, %arg7: memref<16x128xbf16, #tpu.memory_space<vmem>>, %arg8: memref<16x128xf32, #tpu.memory_space<vmem>>) attributes {dimension_semantics = [#tpu.dimension_semantics<parallel>, #tpu.dimension_semantics<arbitrary>], iteration_bounds = array<i64: 1, 1>, scalar_prefetch = 0 : i64, scratch_operands = 1 : i64, tpu.core_type = #tpu.core_type<tc>, window_params = [{transform_indices = @transform_0, window_bounds = array<i64: 16, 128>}, {transform_indices = @transform_1, window_bounds = array<i64: 128, 128>}, {transform_indices = @transform_2, window_bounds = array<i64: 1, 128>}, {transform_indices = @transform_3, window_bounds = array<i64: 128, 128>}, {pipeline_mode = #tpu.pipeline_mode<synchronous>, transform_indices = @transform_4, window_bounds = array<i64: 1, 128>}, {transform_indices = @transform_5, window_bounds = array<i64: 16, 128>}]} {
    %c0_i32 = arith.constant 0 : i32
    %0 = arith.cmpi eq, %arg1, %c0_i32 : i32
    %1 = arith.extui %0 : i1 to i32
    %c0_i32_0 = arith.constant 0 : i32
    %2 = arith.cmpi ne, %1, %c0_i32_0 : i32
    scf.if %2 {
      %cst_30 = arith.constant 0.000000e+00 : f32
      %58 = vector.broadcast %cst_30 : f32 to vector<16x128xf32>
      %c0_31 = arith.constant 0 : index
      %c0_32 = arith.constant 0 : index
      %59 = vector.load %arg8[%c0_31, %c0_32] : memref<16x128xf32, #tpu.memory_space<vmem>>, vector<16x128xf32>
      tpu.vector_store %arg8[%c0_31, %c0_32], %58 {strides = array<i32>} : memref<16x128xf32, #tpu.memory_space<vmem>>, vector<16x128xf32>,
    } else {
    }
    %c0 = arith.constant 0 : index
    %c0_1 = arith.constant 0 : index
    %3 = vector.load %arg2[%c0, %c0_1] : memref<16x128xbf16, #tpu.memory_space<vmem>>, vector<16x128xbf16>
    %c0_2 = arith.constant 0 : index
    %c0_3 = arith.constant 0 : index
    %4 = vector.load %arg3[%c0_2, %c0_3] : memref<128x128xbf16, #tpu.memory_space<vmem>>, vector<128x128xbf16>
    %cst = arith.constant dense<0.000000e+00> : vector<16x128xf32>
    %5 = tpu.matmul %3, %4, %cst {dimension_numbers = #tpu.dot_dimension_numbers<[1], [0], [0], [1], [0, 0, 1, 1], [], []>} : vector<16x128xbf16>, vector<128x128xbf16>, vector<16x128xf32> -> vector<16x128xf32>
    %c0_4 = arith.constant 0 : index
    %c0_5 = arith.constant 0 : index
    %6 = vector.load %arg4[%c0_4, %c0_5] : memref<1x128xf32, #tpu.memory_space<vmem>>, vector<1x128xf32>
    %7 = vector.broadcast %6 : vector<1x128xf32> to vector<16x128xf32>
    %8 = arith.addf %5, %7 : vector<16x128xf32>
    %cst_6 = arith.constant 5.000000e-01 : f32
    %9 = vector.broadcast %cst_6 : f32 to vector<16x128xf32>
    %10 = arith.mulf %9, %8 : vector<16x128xf32>
    %cst_7 = arith.constant 0.707106769 : f32
    %11 = vector.broadcast %cst_7 : f32 to vector<16x128xf32>
    %12 = arith.mulf %8, %11 : vector<16x128xf32>
    %cst_8 = arith.constant 0.000000e+00 : f32
    %13 = vector.broadcast %cst_8 : f32 to vector<16x128xf32>
    %14 = arith.cmpf olt, %12, %13 : vector<16x128xf32>
    %cst_9 = arith.constant -1.000000e+00 : f32
    %cst_10 = arith.constant 1.000000e+00 : f32
    %15 = vector.broadcast %cst_9 : f32 to vector<16x128xf32>
    %16 = vector.broadcast %cst_10 : f32 to vector<16x128xf32>
    %17 = arith.select %14, %15, %16 : vector<16x128xi1>, vector<16x128xf32>
    %18 = math.absf %12 : vector<16x128xf32>
    %cst_11 = arith.constant 0.327591091 : f32
    %19 = vector.broadcast %cst_11 : f32 to vector<16x128xf32>
    %20 = arith.mulf %19, %18 : vector<16x128xf32>
    %cst_12 = arith.constant 1.000000e+00 : f32
    %21 = vector.broadcast %cst_12 : f32 to vector<16x128xf32>
    %22 = arith.addf %21, %20 : vector<16x128xf32>
    %23 = tpu.reciprocal %22 {approx = true} : vector<16x128xf32> -> vector<16x128xf32>
    %cst_13 = arith.constant 1.06140542 : f32
    %24 = vector.broadcast %cst_13 : f32 to vector<16x128xf32>
    %25 = arith.mulf %24, %23 : vector<16x128xf32>
    %cst_14 = arith.constant -1.45315206 : f32
    %26 = vector.broadcast %cst_14 : f32 to vector<16x128xf32>
    %27 = arith.addf %25, %26 : vector<16x128xf32>
    %28 = arith.mulf %27, %23 : vector<16x128xf32>
    %cst_15 = arith.constant 1.42141378 : f32
    %29 = vector.broadcast %cst_15 : f32 to vector<16x128xf32>
    %30 = arith.addf %28, %29 : vector<16x128xf32>
    %31 = arith.mulf %30, %23 : vector<16x128xf32>
    %cst_16 = arith.constant -0.284496725 : f32
    %32 = vector.broadcast %cst_16 : f32 to vector<16x128xf32>
    %33 = arith.addf %31, %32 : vector<16x128xf32>
    %34 = arith.mulf %33, %23 : vector<16x128xf32>
    %cst_17 = arith.constant 0.254829586 : f32
    %35 = vector.broadcast %cst_17 : f32 to vector<16x128xf32>
    %36 = arith.addf %34, %35 : vector<16x128xf32>
    %37 = arith.mulf %36, %23 : vector<16x128xf32>
    %cst_18 = arith.constant 0.000000e+00 : f32
    %38 = vector.broadcast %cst_18 : f32 to vector<16x128xf32>
    %39 = arith.subf %38, %18 : vector<16x128xf32>
    %40 = arith.mulf %39, %18 : vector<16x128xf32>
    %41 = math.exp %40 : vector<16x128xf32>
    %42 = arith.mulf %37, %41 : vector<16x128xf32>
    %cst_19 = arith.constant 1.000000e+00 : f32
    %43 = vector.broadcast %cst_19 : f32 to vector<16x128xf32>
    %44 = arith.subf %43, %42 : vector<16x128xf32>
    %45 = arith.mulf %17, %44 : vector<16x128xf32>
    %cst_20 = arith.constant 1.000000e+00 : f32
    %46 = vector.broadcast %cst_20 : f32 to vector<16x128xf32>
    %47 = arith.addf %46, %45 : vector<16x128xf32>
    %48 = arith.mulf %10, %47 : vector<16x128xf32>
    %c0_21 = arith.constant 0 : index
    %c0_22 = arith.constant 0 : index
    %49 = vector.load %arg8[%c0_21, %c0_22] : memref<16x128xf32, #tpu.memory_space<vmem>>, vector<16x128xf32>
    %50 = arith.truncf %48 : vector<16x128xf32> to vector<16x128xbf16>
    %c0_23 = arith.constant 0 : index
    %c0_24 = arith.constant 0 : index
    %51 = vector.load %arg5[%c0_23, %c0_24] : memref<128x128xbf16, #tpu.memory_space<vmem>>, vector<128x128xbf16>
    %cst_25 = arith.constant dense<0.000000e+00> : vector<16x128xf32>
    %52 = tpu.matmul %50, %51, %cst_25 {dimension_numbers = #tpu.dot_dimension_numbers<[1], [0], [0], [1], [0, 0, 1, 1], [], []>} : vector<16x128xbf16>, vector<128x128xbf16>, vector<16x128xf32> -> vector<16x128xf32>
    %53 = arith.addf %49, %52 : vector<16x128xf32>
    %c0_26 = arith.constant 0 : index
    %c0_27 = arith.constant 0 : index
    %54 = vector.load %arg8[%c0_26, %c0_27] : memref<16x128xf32, #tpu.memory_space<vmem>>, vector<16x128xf32>
    tpu.vector_store %arg8[%c0_26, %c0_27], %53 {strides = array<i32>} : memref<16x128xf32, #tpu.memory_space<vmem>>, vector<16x128xf32>,
    %c0_i32_28 = arith.constant 0 : i32
    %55 = arith.cmpi eq, %arg1, %c0_i32_28 : i32
    %56 = arith.extui %55 : i1 to i32
    %c0_i32_29 = arith.constant 0 : i32
    %57 = arith.cmpi ne, %56, %c0_i32_29 : i32
    scf.if %57 {
      %c0_30 = arith.constant 0 : index
      %c0_31 = arith.constant 0 : index
      %58 = vector.load %arg8[%c0_30, %c0_31] : memref<16x128xf32, #tpu.memory_space<vmem>>, vector<16x128xf32>
      %c0_32 = arith.constant 0 : index
      %c0_33 = arith.constant 0 : index
      %59 = vector.load %arg6[%c0_32, %c0_33] : memref<1x128xf32, #tpu.memory_space<vmem>>, vector<1x128xf32>
      %60 = vector.broadcast %59 : vector<1x128xf32> to vector<16x128xf32>
      %61 = arith.addf %58, %60 : vector<16x128xf32>
      %62 = arith.truncf %61 : vector<16x128xf32> to vector<16x128xbf16>
      %c0_34 = arith.constant 0 : index
      %c0_35 = arith.constant 0 : index
      %63 = vector.load %arg7[%c0_34, %c0_35] : memref<16x128xbf16, #tpu.memory_space<vmem>>, vector<16x128xbf16>
      tpu.vector_store %arg7[%c0_34, %c0_35], %62 {strides = array<i32>} : memref<16x128xbf16, #tpu.memory_space<vmem>>, vector<16x128xbf16>,
    } else {
    }
    return
  }
  func.func @transform_0(%arg0: i32, %arg1: i32) -> (i32, i32) {
    %c0_i32 = arith.constant 0 : i32
    %c0_i32_0 = arith.constant 0 : i32
    return %arg0, %c0_i32 : i32, i32
  }
  func.func @transform_1(%arg0: i32, %arg1: i32) -> (i32, i32) {
    %c0_i32 = arith.constant 0 : i32
    %c0_i32_0 = arith.constant 0 : i32
    return %c0_i32, %arg1 : i32, i32
  }
  func.func @transform_2(%arg0: i32, %arg1: i32) -> (i32, i32) {
    %c0_i32 = arith.constant 0 : i32
    %c0_i32_0 = arith.constant 0 : i32
    return %c0_i32, %arg1 : i32, i32
  }
  func.func @transform_3(%arg0: i32, %arg1: i32) -> (i32, i32) {
    %c0_i32 = arith.constant 0 : i32
    %c0_i32_0 = arith.constant 0 : i32
    return %arg1, %c0_i32 : i32, i32
  }
  func.func @transform_4(%arg0: i32, %arg1: i32) -> (i32, i32) {
    %c0_i32 = arith.constant 0 : i32
    %c0_i32_0 = arith.constant 0 : i32
    %c0_i32_1 = arith.constant 0 : i32
    return %c0_i32, %c0_i32_0 : i32, i32
  }
  func.func @transform_5(%arg0: i32, %arg1: i32) -> (i32, i32) {
    %c0_i32 = arith.constant 0 : i32
    %c0_i32_0 = arith.constant 0 : i32
    return %arg0, %c0_i32 : i32, i32
  }
}

</mosaic_0001>

<llo_original>
// kernel: feed_forward.1
$region0: #{feed_forward.1}
  #allocation0 [shape = 'u32[]', space=smem, size = 0x4, offset = 0x4, fixed_abs, tag = 'smem constant byte address 0x4 - core index']
  #allocation1 [shape = 'u32[144,128]{1,0:T(1,128)}', space=vmem, size = 0x12000, scoped, tag = 'internal scratch']
  #allocation2 [shape = 'f32[16,128]{1,0:T(8,128)}', space=vmem, size = 0x2000, scoped, tag = 'scratch operand']
  %s0 = inlined_call_operand.vmem [shape: bf16[16,128], index: 0, kind: input, shape index: {}]
  %s1 = inlined_call_operand.hbm [shape: bf16[128,128], index: 1, kind: input, shape index: {}]
  %s2 = inlined_call_operand.vmem [shape: f32[1,128], index: 2, kind: input, shape index: {}]
  %s3 = inlined_call_operand.hbm [shape: bf16[128,128], index: 3, kind: input, shape index: {}]
  %s4 = inlined_call_operand.vmem [shape: f32[1,128], index: 4, kind: input, shape index: {}]
  %s5 = inlined_call_operand.vmem [shape: bf16[16,128], index: 5, kind: output, shape index: {}]
  %s6 = sld [smem:[#allocation0]]
  $region46: #{feed_forward.1} parent=0
    _
  %s8 = ssub.s32 1, %s6
  %s9 = scalar_select 0, %s8, %s6
  $region1: #{feed_forward.1} parent=0
    #allocation3 [shape = 'u8[32768]{0}', space=vmem, size = 0x8000, scoped, tag = 'input window, operand 1, single buffered']
    #allocation4 [shape = 's32[1]{0}', space=sflag, size = 0x4, scoped, tag = 'scoped memory for feed_forward.1']
    #allocation5 [shape = 'u8[32768]{0}', space=vmem, size = 0x8000, scoped, tag = 'input window, operand 3, single buffered']
    #allocation6 [shape = 's32[1]{0}', space=sflag, size = 0x4, scoped, tag = 'scoped memory for feed_forward.1']
    %10 = vsyncpa [#allocation4], 0
    %11 = vsyncpa [#allocation6], 0
    // Predicated region
    $region2: #{feed_forward.1} parent=1 // pred_check
      _
    $region3: #{feed_forward.1} parent=1 // pred_check_branch
      %13 = sbr.rel (0) target = $region5
    $region4: #{feed_forward.1} parent=1 // pred_region
      _
    $region5: #{feed_forward.1} parent=1 // pred_fallthru
      _
    // Predicated region
    $region6: #{feed_forward.1} parent=1 // pred_check
      _
    $region7: #{feed_forward.1} parent=1 // pred_check_branch
      %15 = sbr.rel (0) target = $region9
    $region8: #{feed_forward.1} parent=1 // pred_region
      %s17 = ssub.s32 1024, 1024
      %18 = vsyncadd [#allocation4], %s17
      %s19 = sshll.u32 [#allocation3], 4
      %s20 = int_to_ptr.vmem [resolvable:$true] %s19
      %25 = dma.hbm_to_vmem [thread:$0]  %s1, 1024, %s20, [#allocation4], 64, 64, 4
    $region9: #{feed_forward.1} parent=1 // pred_fallthru
      _
    // Predicated region
    $region10: #{feed_forward.1} parent=1 // pred_check
      _
    $region11: #{feed_forward.1} parent=1 // pred_check_branch
      %27 = sbr.rel (0) target = $region13
    $region12: #{feed_forward.1} parent=1 // pred_region
      _
    $region13: #{feed_forward.1} parent=1 // pred_fallthru
      _
    // Predicated region
    $region14: #{feed_forward.1} parent=1 // pred_check
      _
    $region15: #{feed_forward.1} parent=1 // pred_check_branch
      %29 = sbr.rel (0) target = $region17
    $region16: #{feed_forward.1} parent=1 // pred_region
      %s31 = ssub.s32 1024, 1024
      %32 = vsyncadd [#allocation6], %s31
      %s33 = sshll.u32 [#allocation5], 4
      %s34 = int_to_ptr.vmem [resolvable:$true] %s33
      %39 = dma.hbm_to_vmem [thread:$0]  %s3, 1024, %s34, [#allocation6], 64, 64, 4
    $region17: #{feed_forward.1} parent=1 // pred_fallthru
      _
    // Predicated region
    $region18: #{feed_forward.1} parent=1 // pred_check
      _
    $region19: #{feed_forward.1} parent=1 // pred_check_branch
      %41 = sbr.rel (0) target = $region21
    $region20: #{feed_forward.1} parent=1 // pred_region
      _
    $region21: #{feed_forward.1} parent=1 // pred_fallthru
      _
    // Predicated region
    $region22: #{feed_forward.1} parent=1 // pred_check
      _
    $region23: #{feed_forward.1} parent=1 // pred_check_branch
      %43 = sbr.rel (0) target = $region25
    $region24: #{feed_forward.1} parent=1 // pred_region
      %44 = dma.done [#allocation4], 1024
    $region25: #{feed_forward.1} parent=1 // pred_fallthru
      _
    // Predicated region
    $region26: #{feed_forward.1} parent=1 // pred_check
      _
    $region27: #{feed_forward.1} parent=1 // pred_check_branch
      %46 = sbr.rel (0) target = $region29
    $region28: #{feed_forward.1} parent=1 // pred_region
      %47 = dma.done [#allocation6], 1024
    $region29: #{feed_forward.1} parent=1 // pred_fallthru
      _
    %p49 = scmp.eq.s32.totalorder 0, 0
    // Predicated region
    $region30: #{feed_forward.1} parent=1 // pred_check
      %p50 = pneg %p49
    $region31: #{feed_forward.1} parent=1 // pred_check_branch
      %52 = sbr.rel (%p50) target = $region33
    $region32: #{feed_forward.1} parent=1 // pred_region
      %53 = vst [vmem:[#allocation2] sm:$0xff] 0.0
      %54 = vst [vmem:[#allocation2 + $0x8] sm:$0xff] 0.0
    $region33: #{feed_forward.1} parent=1 // pred_fallthru
      _
    %v55 = vld [vmem:[%s0] sm:$0xf]
    %v56 = vld [vmem:[%s0 + $0x4] sm:$0xf]
    %v57 = vld [vmem:[#allocation3] sm:$0xf]
    %v58 = vld [vmem:[#allocation3 + $0x4] sm:$0xf]
    %v59 = vld [vmem:[#allocation3 + $0x8] sm:$0xf]
    %v60 = vld [vmem:[#allocation3 + $0xc] sm:$0xf]
    %v61 = vld [vmem:[#allocation3 + $0x10] sm:$0xf]
    %v62 = vld [vmem:[#allocation3 + $0x14] sm:$0xf]
    %v63 = vld [vmem:[#allocation3 + $0x18] sm:$0xf]
    %v64 = vld [vmem:[#allocation3 + $0x1c] sm:$0xf]
    %v65 = vld [vmem:[#allocation3 + $0x20] sm:$0xf]
    %v66 = vld [vmem:[#allocation3 + $0x24] sm:$0xf]
    %v67 = vld [vmem:[#allocation3 + $0x28] sm:$0xf]
    %v68 = vld [vmem:[#allocation3 + $0x2c] sm:$0xf]
    %v69 = vld [vmem:[#allocation3 + $0x30] sm:$0xf]
    %v70 = vld [vmem:[#allocation3 + $0x34] sm:$0xf]
    %v71 = vld [vmem:[#allocation3 + $0x38] sm:$0xf]
    %v72 = vld [vmem:[#allocation3 + $0x3c] sm:$0xf]
    %v73 = vld [vmem:[%s2] sm:$0x1]
    %v75 = vlaneseq
    %v76 = vshrl.u32 %v75, 7
    %v77 = vsub.s32 0, %v76
    %v78 = vrot.slane %v73, %v77
    %v82 = vunpack.c.l.b16 %v55
    %v83 = vunpack.c.l.b16 %v56
    %v84 = vpack.c.b16 %v83, %v82
    %v102 = vunpack.c.l.b16 %v57
    %v103 = vunpack.c.l.b16 %v58
    %v104 = vunpack.c.l.b16 %v59
    %v105 = vunpack.c.l.b16 %v60
    %v106 = vunpack.c.l.b16 %v61
    %v107 = vunpack.c.l.b16 %v62
    %v108 = vunpack.c.l.b16 %v63
    %v109 = vunpack.c.l.b16 %v64
    %v110 = vunpack.c.l.b16 %v65
    %v111 = vunpack.c.l.b16 %v66
    %v112 = vunpack.c.l.b16 %v67
    %v113 = vunpack.c.l.b16 %v68
    %v114 = vunpack.c.l.b16 %v69
    %v115 = vunpack.c.l.b16 %v70
    %v116 = vunpack.c.l.b16 %v71
    %v117 = vunpack.c.l.b16 %v72
    %v118 = vpack.c.b16 %v103, %v102
    %v119 = vpack.c.b16 %v105, %v104
    %v120 = vpack.c.b16 %v107, %v106
    %v121 = vpack.c.b16 %v109, %v108
    %v122 = vpack.c.b16 %v111, %v110
    %v123 = vpack.c.b16 %v113, %v112
    %v124 = vpack.c.b16 %v115, %v114
    %v125 = vpack.c.b16 %v117, %v116
    %134 = vmatprep.subr.bf16.mxu0 0
    %135 = vmatpush1.bf16.msra.mxu0 %v118
    %136 = vmatprep.subr.bf16.mxu0 0
    %137 = vmatpush1.bf16.msra.mxu0 %v119
    %138 = vmatprep.subr.bf16.mxu0 0
    %139 = vmatpush1.bf16.msra.mxu0 %v120
    %140 = vmatprep.subr.bf16.mxu0 0
    %141 = vmatpush1.bf16.msra.mxu0 %v121
    %142 = vmatprep.subr.bf16.mxu0 0
    %143 = vmatpush1.bf16.msra.mxu0 %v122
    %144 = vmatprep.subr.bf16.mxu0 0
    %145 = vmatpush1.bf16.msra.mxu0 %v123
    %146 = vmatprep.subr.bf16.mxu0 0
    %147 = vmatpush1.bf16.msra.mxu0 %v124
    %148 = vmatprep.subr.bf16.mxu0 0
    %149 = vmatpush1.bf16.msra.mxu0 %v125
    %150 = vmatprep.subr.bf16.mxu0 0
    %151 = vmatpush1.bf16.msra.mxu0 0
    %152 = vmatprep.subr.bf16.mxu0 0
    %153 = vmatpush1.bf16.msra.mxu0 0
    %154 = vmatprep.subr.bf16.mxu0 0
    %155 = vmatpush1.bf16.msra.mxu0 0
    %156 = vmatprep.subr.bf16.mxu0 0
    %157 = vmatpush1.bf16.msra.mxu0 0
    %158 = vmatprep.subr.bf16.mxu0 0
    %159 = vmatpush1.bf16.msra.mxu0 0
    %160 = vmatprep.subr.bf16.mxu0 0
    %161 = vmatpush1.bf16.msra.mxu0 0
    %162 = vmatprep.subr.bf16.mxu0 0
    %163 = vmatpush1.bf16.msra.mxu0 0
    %164 = vmatprep.subr.bf16.mxu0 0
    %165 = vmatpush1.bf16.msra.mxu0 0
    %166 = vmatprep.mubr.bf16.mxu0 0
    %167 = vmatmul.mubr.bf16.gmra.mrb[0].mxu0 %v84
    %v168 = vpop.f32.mrb[0].mxu0
    %v169 = vadd.f32 %v78, %v168
    %v170 = vpop.f32.mrb[0].mxu0
    %v171 = vpop.f32.mrb[0].mxu0
    %v172 = vadd.f32 %v78, %v171
    %v173 = vpop.f32.mrb[0].mxu0
    %174 = vdwg.mxu0
    %v175 = vmul.f32 %v169, 0.5
    %v176 = vmul.f32 %v172, 0.5
    %v177 = vmul.f32 %v169, 0.70710677
    %v178 = vmul.f32 %v172, 0.70710677
    %vm179 = vcmp.lt.f32.partialorder %v177, 0.0
    %vm180 = vcmp.lt.f32.partialorder %v178, 0.0
    %v181 = vsel %vm179, -1.0, 1.0
    %v182 = vsel %vm180, -1.0, 1.0
    %v183 = vand.u32 2147483647, %v177
    %v184 = vand.u32 2147483647, %v178
    %v185 = vmul.f32 %v183, 0.3275911
    %v186 = vmul.f32 %v184, 0.3275911
    %v187 = vadd.f32 %v185, 1.0
    %v188 = vadd.f32 %v186, 1.0
    %v189 = vrcp.pop %v187
    %v190 = vrcp.pop %v188
    %v191 = vmul.f32 %v189, 1.0614054
    %v192 = vmul.f32 %v190, 1.0614054
    %v193 = vadd.f32 %v191, -1.4531521
    %v194 = vadd.f32 %v192, -1.4531521
    %v195 = vmul.f32 %v193, %v189
    %v196 = vmul.f32 %v194, %v190
    %v197 = vadd.f32 %v195, 1.4214138
    %v198 = vadd.f32 %v196, 1.4214138
    %v199 = vmul.f32 %v197, %v189
    %v200 = vmul.f32 %v198, %v190
    %v201 = vadd.f32 %v199, -0.28449672
    %v202 = vadd.f32 %v200, -0.28449672
    %v203 = vmul.f32 %v201, %v189
    %v204 = vmul.f32 %v202, %v190
    %v205 = vadd.f32 %v203, 0.2548296
    %v206 = vadd.f32 %v204, 0.2548296
    %v207 = vmul.f32 %v205, %v189
    %v208 = vmul.f32 %v206, %v190
    %v209 = vsub.f32 0.0, %v183
    %v210 = vsub.f32 0.0, %v184
    %v211 = vmul.f32 %v209, %v183
    %v212 = vmul.f32 %v210, %v184
    %v213 = vmul.f32 %v211, 1.442695
    %v214 = vpow.pop %v213
    %v215 = vmul.f32 %v212, 1.442695
    %v216 = vpow.pop %v215
    %v217 = vmul.f32 %v207, %v214
    %v218 = vmul.f32 %v208, %v216
    %v219 = vsub.f32 1.0, %v217
    %v220 = vsub.f32 1.0, %v218
    %v221 = vmul.f32 %v181, %v219
    %v222 = vmul.f32 %v182, %v220
    %v223 = vadd.f32 %v221, 1.0
    %v224 = vadd.f32 %v222, 1.0
    %v225 = vmul.f32 %v175, %v223
    %v226 = vmul.f32 %v176, %v224
    %v227 = vld [vmem:[#allocation2] sm:$0xff]
    %v228 = vld [vmem:[#allocation2 + $0x8] sm:$0xff]
    %v229 = vpack.c.bf16 %v226, %v225
    %v230 = vld [vmem:[#allocation5] sm:$0xf]
    %v231 = vld [vmem:[#allocation5 + $0x4] sm:$0xf]
    %v232 = vld [vmem:[#allocation5 + $0x8] sm:$0xf]
    %v233 = vld [vmem:[#allocation5 + $0xc] sm:$0xf]
    %v234 = vld [vmem:[#allocation5 + $0x10] sm:$0xf]
    %v235 = vld [vmem:[#allocation5 + $0x14] sm:$0xf]
    %v236 = vld [vmem:[#allocation5 + $0x18] sm:$0xf]
    %v237 = vld [vmem:[#allocation5 + $0x1c] sm:$0xf]
    %v238 = vld [vmem:[#allocation5 + $0x20] sm:$0xf]
    %v239 = vld [vmem:[#allocation5 + $0x24] sm:$0xf]
    %v240 = vld [vmem:[#allocation5 + $0x28] sm:$0xf]
    %v241 = vld [vmem:[#allocation5 + $0x2c] sm:$0xf]
    %v242 = vld [vmem:[#allocation5 + $0x30] sm:$0xf]
    %v243 = vld [vmem:[#allocation5 + $0x34] sm:$0xf]
    %v244 = vld [vmem:[#allocation5 + $0x38] sm:$0xf]
    %v245 = vld [vmem:[#allocation5 + $0x3c] sm:$0xf]
    %v262 = vunpack.c.l.b16 %v230
    %v263 = vunpack.c.l.b16 %v231
    %v264 = vunpack.c.l.b16 %v232
    %v265 = vunpack.c.l.b16 %v233
    %v266 = vunpack.c.l.b16 %v234
    %v267 = vunpack.c.l.b16 %v235
    %v268 = vunpack.c.l.b16 %v236
    %v269 = vunpack.c.l.b16 %v237
    %v270 = vunpack.c.l.b16 %v238
    %v271 = vunpack.c.l.b16 %v239
    %v272 = vunpack.c.l.b16 %v240
    %v273 = vunpack.c.l.b16 %v241
    %v274 = vunpack.c.l.b16 %v242
    %v275 = vunpack.c.l.b16 %v243
    %v276 = vunpack.c.l.b16 %v244
    %v277 = vunpack.c.l.b16 %v245
    %v278 = vpack.c.b16 %v263, %v262
    %v279 = vpack.c.b16 %v265, %v264
    %v280 = vpack.c.b16 %v267, %v266
    %v281 = vpack.c.b16 %v269, %v268
    %v282 = vpack.c.b16 %v271, %v270
    %v283 = vpack.c.b16 %v273, %v272
    %v284 = vpack.c.b16 %v275, %v274
    %v285 = vpack.c.b16 %v277, %v276
    %294 = vmatprep.subr.bf16.mxu0 0
    %295 = vmatpush1.bf16.msra.mxu0 %v278
    %296 = vmatprep.subr.bf16.mxu0 0
    %297 = vmatpush1.bf16.msra.mxu0 %v279
    %298 = vmatprep.subr.bf16.mxu0 0
    %299 = vmatpush1.bf16.msra.mxu0 %v280
    %300 = vmatprep.subr.bf16.mxu0 0
    %301 = vmatpush1.bf16.msra.mxu0 %v281
    %302 = vmatprep.subr.bf16.mxu0 0
    %303 = vmatpush1.bf16.msra.mxu0 %v282
    %304 = vmatprep.subr.bf16.mxu0 0
    %305 = vmatpush1.bf16.msra.mxu0 %v283
    %306 = vmatprep.subr.bf16.mxu0 0
    %307 = vmatpush1.bf16.msra.mxu0 %v284
    %308 = vmatprep.subr.bf16.mxu0 0
    %309 = vmatpush1.bf16.msra.mxu0 %v285
    %310 = vmatprep.subr.bf16.mxu0 0
    %311 = vmatpush1.bf16.msra.mxu0 0
    %312 = vmatprep.subr.bf16.mxu0 0
    %313 = vmatpush1.bf16.msra.mxu0 0
    %314 = vmatprep.subr.bf16.mxu0 0
    %315 = vmatpush1.bf16.msra.mxu0 0
    %316 = vmatprep.subr.bf16.mxu0 0
    %317 = vmatpush1.bf16.msra.mxu0 0
    %318 = vmatprep.subr.bf16.mxu0 0
    %319 = vmatpush1.bf16.msra.mxu0 0
    %320 = vmatprep.subr.bf16.mxu0 0
    %321 = vmatpush1.bf16.msra.mxu0 0
    %322 = vmatprep.subr.bf16.mxu0 0
    %323 = vmatpush1.bf16.msra.mxu0 0
    %324 = vmatprep.subr.bf16.mxu0 0
    %325 = vmatpush1.bf16.msra.mxu0 0
    %326 = vmatprep.mubr.bf16.mxu0 0
    %327 = vmatmul.mubr.bf16.gmra.mrb[0].mxu0 %v229
    %v328 = vpop.f32.mrb[0].mxu0
    %v329 = vadd.f32 0.0, %v328
    %v330 = vpop.f32.mrb[0].mxu0
    %v331 = vpop.f32.mrb[0].mxu0
    %v332 = vadd.f32 0.0, %v331
    %v333 = vpop.f32.mrb[0].mxu0
    %334 = vdwg.mxu0
    %v335 = vadd.f32 %v227, %v329
    %v336 = vadd.f32 %v228, %v332
    %337 = vst [vmem:[#allocation2] sm:$0xff] %v335
    %338 = vst [vmem:[#allocation2 + $0x8] sm:$0xff] %v336
    // Predicated region
    $region34: #{feed_forward.1} parent=1 // pred_check
      %p339 = pneg %p49
    $region35: #{feed_forward.1} parent=1 // pred_check_branch
      %341 = sbr.rel (%p339) target = $region37
    $region36: #{feed_forward.1} parent=1 // pred_region
      %v342 = vld [vmem:[#allocation2] sm:$0xff]
      %v343 = vld [vmem:[#allocation2 + $0x8] sm:$0xff]
      %v344 = vld [vmem:[%s4] sm:$0x1]
      %v346 = vlaneseq
      %v347 = vshrl.u32 %v346, 7
      %v348 = vsub.s32 0, %v347
      %v349 = vrot.slane %v344, %v348
      %v351 = vadd.f32 %v342, %v349
      %v352 = vadd.f32 %v343, %v349
      %v353 = vpack.c.bf16 %v352, %v351
      %v355 = vunpack.c.l.b16 %v353
      %v356 = vunpack.c.h.b16 %v353
      %v357 = vpack.c.b16 %v355, %v355
      %v358 = vpack.c.b16 %v356, %v356
      %361 = vst [vmem:[%s5] sm:$0xf] %v357
      %362 = vst [vmem:[%s5 + $0x4] sm:$0xf] %v358
    $region37: #{feed_forward.1} parent=1 // pred_fallthru
      _
    // Predicated region
    $region38: #{feed_forward.1} parent=1 // pred_check
      _
    $region39: #{feed_forward.1} parent=1 // pred_check_branch
      %364 = sbr.rel (0) target = $region41
    $region40: #{feed_forward.1} parent=1 // pred_region
      _
    $region41: #{feed_forward.1} parent=1 // pred_fallthru
      _
    // Predicated region
    $region42: #{feed_forward.1} parent=1 // pred_check
      _
    $region43: #{feed_forward.1} parent=1 // pred_check_branch
      %366 = sbr.rel (0) target = $region45
    $region44: #{feed_forward.1} parent=1 // pred_region
      _
    $region45: #{feed_forward.1} parent=1 // pred_fallthru
      _
    %367 = vsyncpa [#allocation4], 1
    %368 = vsyncpa [#allocation6], 1

</llo_original>
